<compile_context>
chip_gen: v7x
topology: tpu7x:2x2x1
jax: 0.10.0
libtpu: 0.0.40
codegen_flags: <defaults>
</compile_context>

<pallas_src>
import jax
import jax.numpy as jnp
from jax.experimental import pallas as pl
from jax.experimental.pallas import tpu as pltpu


def _dense_mat_emb2_kernel(x_ref, w0_ref, b0_ref, w1_ref, b1_ref, w2_ref,
                           b2_ref, o_ref):
    # x_ref : [T, 14]   activations for this row tile (native dtype, cast here)
    # w0_ref: [14, H]   b0_ref: [1, H]
    # w1_ref: [H, H]    b1_ref: [1, H]
    # w2_ref: [H, H]    b2_ref: [1, H]
    # o_ref : [T, H]    single lane-dense store
    x = x_ref[...].astype(jnp.float32)

    # begein: Linear(14 -> H)
    h = jnp.dot(x, w0_ref[...], preferred_element_type=jnp.float32) + b0_ref[...]

    # res_mlp: h + fc2(relu(fc1(h)))
    z = jnp.dot(h, w1_ref[...], preferred_element_type=jnp.float32) + b1_ref[...]
    z = jnp.maximum(z, 0.0)
    o = h + jnp.dot(z, w2_ref[...], preferred_element_type=jnp.float32) + b2_ref[...]

    o_ref[...] = o.astype(o_ref.dtype)


def dense_mat_emb2(point_dist_mat, point_masks, params, *, row_tile=512):
    """Pallas forward of DenseMatEmb2.

    point_dist_mat: [B, L, 14]  (any float dtype; cast happens inside the kernel)
    point_masks:    unused by the forward pass (kept for signature parity)
    params: dict with w0 [14,H], b0 [1,H], w1 [H,H], b1 [1,H], w2 [H,H], b2 [1,H]
    returns: [B, L-2, H] float32
    """
    del point_masks  # not used by the original forward
    B, L, d_in = point_dist_mat.shape
    H = params["w0"].shape[1]
    R = B * L

    # Big row tiles amortize the ~0.35us/step overhead; clamp for tiny inputs
    # (row_tile must be a multiple of 8 or equal to the full row extent).
    row_tile = max(8, min(row_tile, R))
    R_pad = pl.cdiv(R, row_tile) * row_tile

    x = point_dist_mat.reshape(R, d_in)          # no wrapper-side dtype cast
    if R_pad != R:
        x = jnp.pad(x, ((0, R_pad - R), (0, 0)))

    def wspec(shape):
        return pl.BlockSpec(shape, lambda r: (0, 0))  # resident weight tile

    out = pl.pallas_call(
        _dense_mat_emb2_kernel,
        out_shape=jax.ShapeDtypeStruct((R_pad, H), jnp.float32),
        grid_spec=pltpu.PrefetchScalarGridSpec(
            num_scalar_prefetch=0,
            grid=(R_pad // row_tile,),
            in_specs=[
                pl.BlockSpec((row_tile, d_in), lambda r: (r, 0)),
                wspec((d_in, H)), wspec((1, H)),
                wspec((H, H)),    wspec((1, H)),
                wspec((H, H)),    wspec((1, H)),
            ],
            out_specs=pl.BlockSpec((row_tile, H), lambda r: (r, 0)),
        ),
        compiler_params=pltpu.CompilerParams(
            dimension_semantics=("parallel",)),
    )(x, params["w0"], params["b0"], params["w1"], params["b1"],
      params["w2"], params["b2"])

    out = out[:R].reshape(B, L, H)
    return out[:, 2:, :]


def init_params(key, d_in, hidden):
    """PyTorch nn.Linear-style uniform init for the three linear layers."""
    def lin(kw, kb, fan_in, fan_out):
        bound = 1.0 / (fan_in ** 0.5)
        w = jax.random.uniform(kw, (fan_in, fan_out), jnp.float32, -bound, bound)
        b = jax.random.uniform(kb, (1, fan_out), jnp.float32, -bound, bound)
        return w, b

    ks = jax.random.split(key, 6)
    w0, b0 = lin(ks[0], ks[1], d_in, hidden)
    w1, b1 = lin(ks[2], ks[3], hidden, hidden)
    w2, b2 = lin(ks[4], ks[5], hidden, hidden)
    return dict(w0=w0, b0=b0, w1=w1, b1=b1, w2=w2, b2=b2)


if __name__ == "__main__":
    key = jax.random.PRNGKey(0)
    k_p, k_x = jax.random.split(key, 2)

    # Small shapes implied by the forward: x = [batch, seq, 14], hidden lane-dense (128).
    B, L, D_IN, HIDDEN = 2, 16, 14, 128

    params = init_params(k_p, D_IN, HIDDEN)
    point_dist_mat = jax.random.normal(k_x, (B, L, D_IN), jnp.float32)
    point_masks = jnp.ones((B, L), jnp.float32)   # unused by the forward, kept for parity

    out = dense_mat_emb2(point_dist_mat, point_masks, params)
    out = jax.block_until_ready(out)

    # Pure-JAX reference of the same forward pass.
    with jax.default_matmul_precision("float32"):
        h = point_dist_mat @ params["w0"] + params["b0"]
        z = jnp.maximum(h @ params["w1"] + params["b1"], 0.0)
        ref = (h + z @ params["w2"] + params["b2"])[:, 2:, :]

    assert out.shape == (B, L - 2, HIDDEN), out.shape
    assert jnp.allclose(out, ref, atol=1e-3, rtol=1e-3), "mismatch vs reference"

    print("KERNEL_OK")
</pallas_src>

<mosaic_0001>
module attributes {stable_mosaic.version = 11 : i64} {
  func.func @_dense_mat_emb2_kernel(%arg0: i32, %arg1: memref<32x14xf32, #tpu.memory_space<vmem>>, %arg2: memref<14x128xf32, #tpu.memory_space<vmem>>, %arg3: memref<1x128xf32, #tpu.memory_space<vmem>>, %arg4: memref<128x128xf32, #tpu.memory_space<vmem>>, %arg5: memref<1x128xf32, #tpu.memory_space<vmem>>, %arg6: memref<128x128xf32, #tpu.memory_space<vmem>>, %arg7: memref<1x128xf32, #tpu.memory_space<vmem>>, %arg8: memref<32x128xf32, #tpu.memory_space<vmem>>) attributes {dimension_semantics = [#tpu.dimension_semantics<parallel>], iteration_bounds = array<i64: 1>, scalar_prefetch = 0 : i64, scratch_operands = 0 : i64, tpu.core_type = #tpu.core_type<tc>, window_params = [{transform_indices = @transform_0, window_bounds = array<i64: 32, 14>}, {pipeline_mode = #tpu.pipeline_mode<synchronous>, transform_indices = @transform_1, window_bounds = array<i64: 14, 128>}, {pipeline_mode = #tpu.pipeline_mode<synchronous>, transform_indices = @transform_2, window_bounds = array<i64: 1, 128>}, {pipeline_mode = #tpu.pipeline_mode<synchronous>, transform_indices = @transform_3, window_bounds = array<i64: 128, 128>}, {pipeline_mode = #tpu.pipeline_mode<synchronous>, transform_indices = @transform_4, window_bounds = array<i64: 1, 128>}, {pipeline_mode = #tpu.pipeline_mode<synchronous>, transform_indices = @transform_5, window_bounds = array<i64: 128, 128>}, {pipeline_mode = #tpu.pipeline_mode<synchronous>, transform_indices = @transform_6, window_bounds = array<i64: 1, 128>}, {transform_indices = @transform_7, window_bounds = array<i64: 32, 128>}]} {
    %c0 = arith.constant 0 : index
    %c0_0 = arith.constant 0 : index
    %0 = vector.load %arg1[%c0, %c0_0] : memref<32x14xf32, #tpu.memory_space<vmem>>, vector<32x14xf32>
    %c0_1 = arith.constant 0 : index
    %c0_2 = arith.constant 0 : index
    %1 = vector.load %arg2[%c0_1, %c0_2] : memref<14x128xf32, #tpu.memory_space<vmem>>, vector<14x128xf32>
    %cst = arith.constant dense<0.000000e+00> : vector<32x128xf32>
    %2 = tpu.matmul %0, %1, %cst {dimension_numbers = #tpu.dot_dimension_numbers<[1], [0], [0], [1], [0, 0, 1, 1], [], []>} : vector<32x14xf32>, vector<14x128xf32>, vector<32x128xf32> -> vector<32x128xf32>
    %c0_3 = arith.constant 0 : index
    %c0_4 = arith.constant 0 : index
    %3 = vector.load %arg3[%c0_3, %c0_4] : memref<1x128xf32, #tpu.memory_space<vmem>>, vector<1x128xf32>
    %4 = vector.broadcast %3 : vector<1x128xf32> to vector<32x128xf32>
    %5 = arith.addf %2, %4 : vector<32x128xf32>
    %c0_5 = arith.constant 0 : index
    %c0_6 = arith.constant 0 : index
    %6 = vector.load %arg4[%c0_5, %c0_6] : memref<128x128xf32, #tpu.memory_space<vmem>>, vector<128x128xf32>
    %cst_7 = arith.constant dense<0.000000e+00> : vector<32x128xf32>
    %7 = tpu.matmul %5, %6, %cst_7 {dimension_numbers = #tpu.dot_dimension_numbers<[1], [0], [0], [1], [0, 0, 1, 1], [], []>} : vector<32x128xf32>, vector<128x128xf32>, vector<32x128xf32> -> vector<32x128xf32>
    %c0_8 = arith.constant 0 : index
    %c0_9 = arith.constant 0 : index
    %8 = vector.load %arg5[%c0_8, %c0_9] : memref<1x128xf32, #tpu.memory_space<vmem>>, vector<1x128xf32>
    %9 = vector.broadcast %8 : vector<1x128xf32> to vector<32x128xf32>
    %10 = arith.addf %7, %9 : vector<32x128xf32>
    %cst_10 = arith.constant 0.000000e+00 : f32
    %11 = vector.broadcast %cst_10 : f32 to vector<32x128xf32>
    %12 = arith.maximumf %10, %11 : vector<32x128xf32>
    %c0_11 = arith.constant 0 : index
    %c0_12 = arith.constant 0 : index
    %13 = vector.load %arg6[%c0_11, %c0_12] : memref<128x128xf32, #tpu.memory_space<vmem>>, vector<128x128xf32>
    %cst_13 = arith.constant dense<0.000000e+00> : vector<32x128xf32>
    %14 = tpu.matmul %12, %13, %cst_13 {dimension_numbers = #tpu.dot_dimension_numbers<[1], [0], [0], [1], [0, 0, 1, 1], [], []>} : vector<32x128xf32>, vector<128x128xf32>, vector<32x128xf32> -> vector<32x128xf32>
    %15 = arith.addf %5, %14 : vector<32x128xf32>
    %c0_14 = arith.constant 0 : index
    %c0_15 = arith.constant 0 : index
    %16 = vector.load %arg7[%c0_14, %c0_15] : memref<1x128xf32, #tpu.memory_space<vmem>>, vector<1x128xf32>
    %17 = vector.broadcast %16 : vector<1x128xf32> to vector<32x128xf32>
    %18 = arith.addf %15, %17 : vector<32x128xf32>
    %c0_16 = arith.constant 0 : index
    %c0_17 = arith.constant 0 : index
    %19 = vector.load %arg8[%c0_16, %c0_17] : memref<32x128xf32, #tpu.memory_space<vmem>>, vector<32x128xf32>
    tpu.vector_store %arg8[%c0_16, %c0_17], %18 {strides = array<i32>} : memref<32x128xf32, #tpu.memory_space<vmem>>, vector<32x128xf32>,
    return
  }
  func.func @transform_0(%arg0: i32) -> (i32, i32) {
    %c0_i32 = arith.constant 0 : i32
    %c0_i32_0 = arith.constant 0 : i32
    return %arg0, %c0_i32 : i32, i32
  }
  func.func @transform_1(%arg0: i32) -> (i32, i32) {
    %c0_i32 = arith.constant 0 : i32
    %c0_i32_0 = arith.constant 0 : i32
    %c0_i32_1 = arith.constant 0 : i32
    return %c0_i32, %c0_i32_0 : i32, i32
  }
  func.func @transform_2(%arg0: i32) -> (i32, i32) {
    %c0_i32 = arith.constant 0 : i32
    %c0_i32_0 = arith.constant 0 : i32
    %c0_i32_1 = arith.constant 0 : i32
    return %c0_i32, %c0_i32_0 : i32, i32
  }
  func.func @transform_3(%arg0: i32) -> (i32, i32) {
    %c0_i32 = arith.constant 0 : i32
    %c0_i32_0 = arith.constant 0 : i32
    %c0_i32_1 = arith.constant 0 : i32
    return %c0_i32, %c0_i32_0 : i32, i32
  }
  func.func @transform_4(%arg0: i32) -> (i32, i32) {
    %c0_i32 = arith.constant 0 : i32
    %c0_i32_0 = arith.constant 0 : i32
    %c0_i32_1 = arith.constant 0 : i32
    return %c0_i32, %c0_i32_0 : i32, i32
  }
  func.func @transform_5(%arg0: i32) -> (i32, i32) {
    %c0_i32 = arith.constant 0 : i32
    %c0_i32_0 = arith.constant 0 : i32
    %c0_i32_1 = arith.constant 0 : i32
    return %c0_i32, %c0_i32_0 : i32, i32
  }
  func.func @transform_6(%arg0: i32) -> (i32, i32) {
    %c0_i32 = arith.constant 0 : i32
    %c0_i32_0 = arith.constant 0 : i32
    %c0_i32_1 = arith.constant 0 : i32
    return %c0_i32, %c0_i32_0 : i32, i32
  }
  func.func @transform_7(%arg0: i32) -> (i32, i32) {
    %c0_i32 = arith.constant 0 : i32
    %c0_i32_0 = arith.constant 0 : i32
    return %arg0, %c0_i32 : i32, i32
  }
}

</mosaic_0001>

<llo_original>
// kernel: tpu_custom_call.1
$region0: #{tpu_custom_call.1}
  #allocation0 [shape = 'u32[]', space=smem, size = 0x4, offset = 0x4, fixed_abs, tag = 'smem constant byte address 0x4 - core index']
  #allocation1 [shape = 'u32[144,128]{1,0:T(1,128)}', space=vmem, size = 0x12000, scoped, tag = 'internal scratch']
  %s0 = inlined_call_operand.vmem [shape: f32[32,14], index: 0, kind: input, shape index: {}]
  %s1 = inlined_call_operand.vmem [shape: f32[14,128], index: 1, kind: input, shape index: {}]
  %s2 = inlined_call_operand.vmem [shape: f32[1,128], index: 2, kind: input, shape index: {}]
  %s3 = inlined_call_operand.hbm [shape: f32[128,128], index: 3, kind: input, shape index: {}]
  %s4 = inlined_call_operand.vmem [shape: f32[1,128], index: 4, kind: input, shape index: {}]
  %s5 = inlined_call_operand.hbm [shape: f32[128,128], index: 5, kind: input, shape index: {}]
  %s6 = inlined_call_operand.vmem [shape: f32[1,128], index: 6, kind: input, shape index: {}]
  %s7 = inlined_call_operand.hbm [shape: f32[32,128], index: 7, kind: output, shape index: {}]
  %s8 = sld [smem:[#allocation0]]
  $region46: #{tpu_custom_call.1} parent=0
    _
  %s10 = ssub.s32 1, %s8
  %s11 = scalar_select 0, %s10, %s8
  $region1: #{tpu_custom_call.1} parent=0
    #allocation2 [shape = 'u8[65536]{0}', space=vmem, size = 0x10000, scoped, tag = 'input window, operand 3, single buffered']
    #allocation3 [shape = 's32[1]{0}', space=sflag, size = 0x4, scoped, tag = 'scoped memory for tpu_custom_call.1']
    #allocation4 [shape = 's32[1]{0}', space=sflag, size = 0x4, scoped, tag = 'scoped memory for tpu_custom_call.1']
    #allocation5 [shape = 'u8[65536]{0}', space=vmem, size = 0x10000, scoped, tag = 'input window, operand 5, single buffered']
    #allocation6 [shape = 's32[1]{0}', space=sflag, size = 0x4, scoped, tag = 'scoped memory for tpu_custom_call.1']
    #allocation7 [shape = 'u8[16384]{0}', space=vmem, size = 0x4000, scoped, tag = 'output window, operand 0, single buffered']
    %12 = vsyncpa [#allocation3], 0
    %13 = vsyncpa [#allocation6], 0
    %14 = vsyncpa [#allocation4], 0
    // Predicated region
    $region2: #{tpu_custom_call.1} parent=1 // pred_check
      _
    $region3: #{tpu_custom_call.1} parent=1 // pred_check_branch
      %16 = sbr.rel (0) target = $region5
    $region4: #{tpu_custom_call.1} parent=1 // pred_region
      _
    $region5: #{tpu_custom_call.1} parent=1 // pred_fallthru
      _
    // Predicated region
    $region6: #{tpu_custom_call.1} parent=1 // pred_check
      _
    $region7: #{tpu_custom_call.1} parent=1 // pred_check_branch
      %18 = sbr.rel (0) target = $region9
    $region8: #{tpu_custom_call.1} parent=1 // pred_region
      _
    $region9: #{tpu_custom_call.1} parent=1 // pred_fallthru
      _
    // Predicated region
    $region10: #{tpu_custom_call.1} parent=1 // pred_check
      _
    $region11: #{tpu_custom_call.1} parent=1 // pred_check_branch
      %20 = sbr.rel (0) target = $region13
    $region12: #{tpu_custom_call.1} parent=1 // pred_region
      _
    $region13: #{tpu_custom_call.1} parent=1 // pred_fallthru
      _
    // Predicated region
    $region14: #{tpu_custom_call.1} parent=1 // pred_check
      _
    $region15: #{tpu_custom_call.1} parent=1 // pred_check_branch
      %22 = sbr.rel (0) target = $region17
    $region16: #{tpu_custom_call.1} parent=1 // pred_region
      %s24 = ssub.s32 2048, 2048
      %25 = vsyncadd [#allocation3], %s24
      %s26 = sshll.u32 [#allocation2], 4
      %s27 = int_to_ptr.vmem [resolvable:$true] %s26
      %32 = dma.hbm_to_vmem [thread:$0]  %s3, 2048, %s27, [#allocation3], 128, 128, 8
    $region17: #{tpu_custom_call.1} parent=1 // pred_fallthru
      _
    // Predicated region
    $region18: #{tpu_custom_call.1} parent=1 // pred_check
      _
    $region19: #{tpu_custom_call.1} parent=1 // pred_check_branch
      %34 = sbr.rel (0) target = $region21
    $region20: #{tpu_custom_call.1} parent=1 // pred_region
      _
    $region21: #{tpu_custom_call.1} parent=1 // pred_fallthru
      _
    // Predicated region
    $region22: #{tpu_custom_call.1} parent=1 // pred_check
      _
    $region23: #{tpu_custom_call.1} parent=1 // pred_check_branch
      %36 = sbr.rel (0) target = $region25
    $region24: #{tpu_custom_call.1} parent=1 // pred_region
      %s38 = ssub.s32 2048, 2048
      %39 = vsyncadd [#allocation6], %s38
      %s40 = sshll.u32 [#allocation5], 4
      %s41 = int_to_ptr.vmem [resolvable:$true] %s40
      %46 = dma.hbm_to_vmem [thread:$0]  %s5, 2048, %s41, [#allocation6], 128, 128, 8
    $region25: #{tpu_custom_call.1} parent=1 // pred_fallthru
      _
    // Predicated region
    $region26: #{tpu_custom_call.1} parent=1 // pred_check
      _
    $region27: #{tpu_custom_call.1} parent=1 // pred_check_branch
      %48 = sbr.rel (0) target = $region29
    $region28: #{tpu_custom_call.1} parent=1 // pred_region
      _
    $region29: #{tpu_custom_call.1} parent=1 // pred_fallthru
      _
    // Predicated region
    $region30: #{tpu_custom_call.1} parent=1 // pred_check
      _
    $region31: #{tpu_custom_call.1} parent=1 // pred_check_branch
      %50 = sbr.rel (0) target = $region33
    $region32: #{tpu_custom_call.1} parent=1 // pred_region
      %51 = dma.done [#allocation3], 2048
    $region33: #{tpu_custom_call.1} parent=1 // pred_fallthru
      _
    // Predicated region
    $region34: #{tpu_custom_call.1} parent=1 // pred_check
      _
    $region35: #{tpu_custom_call.1} parent=1 // pred_check_branch
      %53 = sbr.rel (0) target = $region37
    $region36: #{tpu_custom_call.1} parent=1 // pred_region
      %54 = dma.done [#allocation6], 2048
    $region37: #{tpu_custom_call.1} parent=1 // pred_fallthru
      _
    %v55 = vld [vmem:[%s0] sm:$0xff]
    %v56 = vld [vmem:[%s0 + $0x8] sm:$0xff]
    %v57 = vld [vmem:[%s0 + $0x10] sm:$0xff]
    %v58 = vld [vmem:[%s0 + $0x18] sm:$0xff]
    %v59 = vld [vmem:[%s1] sm:$0xff]
    %v60 = vld [vmem:[%s1 + $0x8] sm:$0x3f]
    %v61 = vld [vmem:[%s2] sm:$0x1]
    %v63 = vlaneseq
    %v64 = vshrl.u32 %v63, 7
    %v65 = vsub.s32 0, %v64
    %v66 = vrot.slane %v61, %v65
    %vm68 = vcmask 113664
    %v70 = vsel %vm68, %v55, 0
    %v73 = vsel %vm68, %v56, 0
    %v76 = vsel %vm68, %v57, 0
    %v79 = vsel %vm68, %v58, 0
    %vm81 = vcmask 1045504
    %v83 = vsel %vm81, %v60, 0
    %85 = vmatprep.subr.mxu0 0.0
    %86 = vmatpush1.msra.mxu0 %v59
    %87 = vmatprep.subr.mxu0 0.0
    %88 = vmatpush1.msra.mxu0 %v83
    %89 = vmatprep.subr.mxu0 0.0
    %90 = vmatpush1.msra.mxu0 0.0
    %91 = vmatprep.subr.mxu0 0.0
    %92 = vmatpush1.msra.mxu0 0.0
    %93 = vmatprep.subr.mxu0 0.0
    %94 = vmatpush1.msra.mxu0 0.0
    %95 = vmatprep.subr.mxu0 0.0
    %96 = vmatpush1.msra.mxu0 0.0
    %97 = vmatprep.subr.mxu0 0.0
    %98 = vmatpush1.msra.mxu0 0.0
    %99 = vmatprep.subr.mxu0 0.0
    %100 = vmatpush1.msra.mxu0 0.0
    %101 = vmatprep.subr.mxu0 0.0
    %102 = vmatpush1.msra.mxu0 0.0
    %103 = vmatprep.subr.mxu0 0.0
    %104 = vmatpush1.msra.mxu0 0.0
    %105 = vmatprep.subr.mxu0 0.0
    %106 = vmatpush1.msra.mxu0 0.0
    %107 = vmatprep.subr.mxu0 0.0
    %108 = vmatpush1.msra.mxu0 0.0
    %109 = vmatprep.subr.mxu0 0.0
    %110 = vmatpush1.msra.mxu0 0.0
    %111 = vmatprep.subr.mxu0 0.0
    %112 = vmatpush1.msra.mxu0 0.0
    %113 = vmatprep.subr.mxu0 0.0
    %114 = vmatpush1.msra.mxu0 0.0
    %115 = vmatprep.subr.mxu0 0.0
    %116 = vmatpush1.msra.mxu0 0.0
    %117 = vmatprep.subr.mxu0 0.0
    %118 = vmatpush1.msra.mxu0 0.0
    %119 = vmatprep.subr.mxu0 0.0
    %120 = vmatpush1.msra.mxu0 0.0
    %121 = vmatprep.subr.mxu0 0.0
    %122 = vmatpush1.msra.mxu0 0.0
    %123 = vmatprep.subr.mxu0 0.0
    %124 = vmatpush1.msra.mxu0 0.0
    %125 = vmatprep.subr.mxu0 0.0
    %126 = vmatpush1.msra.mxu0 0.0
    %127 = vmatprep.subr.mxu0 0.0
    %128 = vmatpush1.msra.mxu0 0.0
    %129 = vmatprep.subr.mxu0 0.0
    %130 = vmatpush1.msra.mxu0 0.0
    %131 = vmatprep.subr.mxu0 0.0
    %132 = vmatpush1.msra.mxu0 0.0
    %133 = vmatprep.subr.mxu0 0.0
    %134 = vmatpush1.msra.mxu0 0.0
    %135 = vmatprep.subr.mxu0 0.0
    %136 = vmatpush1.msra.mxu0 0.0
    %137 = vmatprep.subr.mxu0 0.0
    %138 = vmatpush1.msra.mxu0 0.0
    %139 = vmatprep.subr.mxu0 0.0
    %140 = vmatpush1.msra.mxu0 0.0
    %141 = vmatprep.subr.mxu0 0.0
    %142 = vmatpush1.msra.mxu0 0.0
    %143 = vmatprep.subr.mxu0 0.0
    %144 = vmatpush1.msra.mxu0 0.0
    %145 = vmatprep.subr.mxu0 0.0
    %146 = vmatpush1.msra.mxu0 0.0
    %147 = vmatprep.subr.mxu0 0.0
    %148 = vmatpush1.msra.mxu0 0.0
    %149 = vmatprep.mubr.f32.mxu0 0.0
    %150 = vmatmul.mubr.f32.gmra.mrb[0].mxu0 %v70
    %v151 = vpop.f32.mrb[0].mxu0
    %v152 = vadd.f32 %v66, %v151
    %v153 = vpop.f32.mrb[0].mxu0
    %154 = vmatprep.mubr.f32.mxu0 0.0
    %155 = vmatmul.mubr.f32.gmra.mrb[0].mxu0 %v73
    %v156 = vpop.f32.mrb[0].mxu0
    %v157 = vadd.f32 %v66, %v156
    %v158 = vpop.f32.mrb[0].mxu0
    %159 = vmatprep.mubr.f32.mxu0 0.0
    %160 = vmatmul.mubr.f32.gmra.mrb[0].mxu0 %v76
    %v161 = vpop.f32.mrb[0].mxu0
    %v162 = vadd.f32 %v66, %v161
    %v163 = vpop.f32.mrb[0].mxu0
    %164 = vmatprep.mubr.f32.mxu0 0.0
    %165 = vmatmul.mubr.f32.gmra.mrb[0].mxu0 %v79
    %v166 = vpop.f32.mrb[0].mxu0
    %v167 = vadd.f32 %v66, %v166
    %v168 = vpop.f32.mrb[0].mxu0
    %169 = vdwg.mxu0
    %v170 = vld [vmem:[#allocation2] sm:$0xff]
    %v171 = vld [vmem:[#allocation2 + $0x8] sm:$0xff]
    %v172 = vld [vmem:[#allocation2 + $0x10] sm:$0xff]
    %v173 = vld [vmem:[#allocation2 + $0x18] sm:$0xff]
    %v174 = vld [vmem:[#allocation2 + $0x20] sm:$0xff]
    %v175 = vld [vmem:[#allocation2 + $0x28] sm:$0xff]
    %v176 = vld [vmem:[#allocation2 + $0x30] sm:$0xff]
    %v177 = vld [vmem:[#allocation2 + $0x38] sm:$0xff]
    %v178 = vld [vmem:[#allocation2 + $0x40] sm:$0xff]
    %v179 = vld [vmem:[#allocation2 + $0x48] sm:$0xff]
    %v180 = vld [vmem:[#allocation2 + $0x50] sm:$0xff]
    %v181 = vld [vmem:[#allocation2 + $0x58] sm:$0xff]
    %v182 = vld [vmem:[#allocation2 + $0x60] sm:$0xff]
    %v183 = vld [vmem:[#allocation2 + $0x68] sm:$0xff]
    %v184 = vld [vmem:[#allocation2 + $0x70] sm:$0xff]
    %v185 = vld [vmem:[#allocation2 + $0x78] sm:$0xff]
    %v186 = vld [vmem:[%s4] sm:$0x1]
    %v188 = vlaneseq
    %v189 = vshrl.u32 %v188, 7
    %v190 = vsub.s32 0, %v189
    %v191 = vrot.slane %v186, %v190
    %193 = vmatprep.subr.mxu0 0.0
    %194 = vmatpush1.msra.mxu0 %v170
    %195 = vmatprep.subr.mxu0 0.0
    %196 = vmatpush1.msra.mxu0 %v171
    %197 = vmatprep.subr.mxu0 0.0
    %198 = vmatpush1.msra.mxu0 %v172
    %199 = vmatprep.subr.mxu0 0.0
    %200 = vmatpush1.msra.mxu0 %v173
    %201 = vmatprep.subr.mxu0 0.0
    %202 = vmatpush1.msra.mxu0 %v174
    %203 = vmatprep.subr.mxu0 0.0
    %204 = vmatpush1.msra.mxu0 %v175
    %205 = vmatprep.subr.mxu0 0.0
    %206 = vmatpush1.msra.mxu0 %v176
    %207 = vmatprep.subr.mxu0 0.0
    %208 = vmatpush1.msra.mxu0 %v177
    %209 = vmatprep.subr.mxu0 0.0
    %210 = vmatpush1.msra.mxu0 %v178
    %211 = vmatprep.subr.mxu0 0.0
    %212 = vmatpush1.msra.mxu0 %v179
    %213 = vmatprep.subr.mxu0 0.0
    %214 = vmatpush1.msra.mxu0 %v180
    %215 = vmatprep.subr.mxu0 0.0
    %216 = vmatpush1.msra.mxu0 %v181
    %217 = vmatprep.subr.mxu0 0.0
    %218 = vmatpush1.msra.mxu0 %v182
    %219 = vmatprep.subr.mxu0 0.0
    %220 = vmatpush1.msra.mxu0 %v183
    %221 = vmatprep.subr.mxu0 0.0
    %222 = vmatpush1.msra.mxu0 %v184
    %223 = vmatprep.subr.mxu0 0.0
    %224 = vmatpush1.msra.mxu0 %v185
    %225 = vmatprep.subr.mxu0 0.0
    %226 = vmatpush1.msra.mxu0 0.0
    %227 = vmatprep.subr.mxu0 0.0
    %228 = vmatpush1.msra.mxu0 0.0
    %229 = vmatprep.subr.mxu0 0.0
    %230 = vmatpush1.msra.mxu0 0.0
    %231 = vmatprep.subr.mxu0 0.0
    %232 = vmatpush1.msra.mxu0 0.0
    %233 = vmatprep.subr.mxu0 0.0
    %234 = vmatpush1.msra.mxu0 0.0
    %235 = vmatprep.subr.mxu0 0.0
    %236 = vmatpush1.msra.mxu0 0.0
    %237 = vmatprep.subr.mxu0 0.0
    %238 = vmatpush1.msra.mxu0 0.0
    %239 = vmatprep.subr.mxu0 0.0
    %240 = vmatpush1.msra.mxu0 0.0
    %241 = vmatprep.subr.mxu0 0.0
    %242 = vmatpush1.msra.mxu0 0.0
    %243 = vmatprep.subr.mxu0 0.0
    %244 = vmatpush1.msra.mxu0 0.0
    %245 = vmatprep.subr.mxu0 0.0
    %246 = vmatpush1.msra.mxu0 0.0
    %247 = vmatprep.subr.mxu0 0.0
    %248 = vmatpush1.msra.mxu0 0.0
    %249 = vmatprep.subr.mxu0 0.0
    %250 = vmatpush1.msra.mxu0 0.0
    %251 = vmatprep.subr.mxu0 0.0
    %252 = vmatpush1.msra.mxu0 0.0
    %253 = vmatprep.subr.mxu0 0.0
    %254 = vmatpush1.msra.mxu0 0.0
    %255 = vmatprep.subr.mxu0 0.0
    %256 = vmatpush1.msra.mxu0 0.0
    %257 = vmatprep.mubr.f32.mxu0 0.0
    %258 = vmatmul.mubr.f32.gmra.mrb[0].mxu0 %v152
    %v259 = vpop.f32.mrb[0].mxu0
    %v260 = vadd.f32 %v191, %v259
    %v261 = vpop.f32.mrb[0].mxu0
    %262 = vmatprep.mubr.f32.mxu0 0.0
    %263 = vmatmul.mubr.f32.gmra.mrb[0].mxu0 %v157
    %v264 = vpop.f32.mrb[0].mxu0
    %v265 = vadd.f32 %v191, %v264
    %v266 = vpop.f32.mrb[0].mxu0
    %267 = vmatprep.mubr.f32.mxu0 0.0
    %268 = vmatmul.mubr.f32.gmra.mrb[0].mxu0 %v162
    %v269 = vpop.f32.mrb[0].mxu0
    %v270 = vadd.f32 %v191, %v269
    %v271 = vpop.f32.mrb[0].mxu0
    %272 = vmatprep.mubr.f32.mxu0 0.0
    %273 = vmatmul.mubr.f32.gmra.mrb[0].mxu0 %v167
    %v274 = vpop.f32.mrb[0].mxu0
    %v275 = vadd.f32 %v191, %v274
    %v276 = vpop.f32.mrb[0].mxu0
    %277 = vdwg.mxu0
    %v278 = vmax.f32 %v260, 0.0
    %v279 = vmax.f32 %v265, 0.0
    %v280 = vmax.f32 %v270, 0.0
    %v281 = vmax.f32 %v275, 0.0
    %v282 = vld [vmem:[#allocation5] sm:$0xff]
    %v283 = vld [vmem:[#allocation5 + $0x8] sm:$0xff]
    %v284 = vld [vmem:[#allocation5 + $0x10] sm:$0xff]
    %v285 = vld [vmem:[#allocation5 + $0x18] sm:$0xff]
    %v286 = vld [vmem:[#allocation5 + $0x20] sm:$0xff]
    %v287 = vld [vmem:[#allocation5 + $0x28] sm:$0xff]
    %v288 = vld [vmem:[#allocation5 + $0x30] sm:$0xff]
    %v289 = vld [vmem:[#allocation5 + $0x38] sm:$0xff]
    %v290 = vld [vmem:[#allocation5 + $0x40] sm:$0xff]
    %v291 = vld [vmem:[#allocation5 + $0x48] sm:$0xff]
    %v292 = vld [vmem:[#allocation5 + $0x50] sm:$0xff]
    %v293 = vld [vmem:[#allocation5 + $0x58] sm:$0xff]
    %v294 = vld [vmem:[#allocation5 + $0x60] sm:$0xff]
    %v295 = vld [vmem:[#allocation5 + $0x68] sm:$0xff]
    %v296 = vld [vmem:[#allocation5 + $0x70] sm:$0xff]
    %v297 = vld [vmem:[#allocation5 + $0x78] sm:$0xff]
    %298 = vmatprep.subr.mxu0 0.0
    %299 = vmatpush1.msra.mxu0 %v282
    %300 = vmatprep.subr.mxu0 0.0
    %301 = vmatpush1.msra.mxu0 %v283
    %302 = vmatprep.subr.mxu0 0.0
    %303 = vmatpush1.msra.mxu0 %v284
    %304 = vmatprep.subr.mxu0 0.0
    %305 = vmatpush1.msra.mxu0 %v285
    %306 = vmatprep.subr.mxu0 0.0
    %307 = vmatpush1.msra.mxu0 %v286
    %308 = vmatprep.subr.mxu0 0.0
    %309 = vmatpush1.msra.mxu0 %v287
    %310 = vmatprep.subr.mxu0 0.0
    %311 = vmatpush1.msra.mxu0 %v288
    %312 = vmatprep.subr.mxu0 0.0
    %313 = vmatpush1.msra.mxu0 %v289
    %314 = vmatprep.subr.mxu0 0.0
    %315 = vmatpush1.msra.mxu0 %v290
    %316 = vmatprep.subr.mxu0 0.0
    %317 = vmatpush1.msra.mxu0 %v291
    %318 = vmatprep.subr.mxu0 0.0
    %319 = vmatpush1.msra.mxu0 %v292
    %320 = vmatprep.subr.mxu0 0.0
    %321 = vmatpush1.msra.mxu0 %v293
    %322 = vmatprep.subr.mxu0 0.0
    %323 = vmatpush1.msra.mxu0 %v294
    %324 = vmatprep.subr.mxu0 0.0
    %325 = vmatpush1.msra.mxu0 %v295
    %326 = vmatprep.subr.mxu0 0.0
    %327 = vmatpush1.msra.mxu0 %v296
    %328 = vmatprep.subr.mxu0 0.0
    %329 = vmatpush1.msra.mxu0 %v297
    %330 = vmatprep.subr.mxu0 0.0
    %331 = vmatpush1.msra.mxu0 0.0
    %332 = vmatprep.subr.mxu0 0.0
    %333 = vmatpush1.msra.mxu0 0.0
    %334 = vmatprep.subr.mxu0 0.0
    %335 = vmatpush1.msra.mxu0 0.0
    %336 = vmatprep.subr.mxu0 0.0
    %337 = vmatpush1.msra.mxu0 0.0
    %338 = vmatprep.subr.mxu0 0.0
    %339 = vmatpush1.msra.mxu0 0.0
    %340 = vmatprep.subr.mxu0 0.0
    %341 = vmatpush1.msra.mxu0 0.0
    %342 = vmatprep.subr.mxu0 0.0
    %343 = vmatpush1.msra.mxu0 0.0
    %344 = vmatprep.subr.mxu0 0.0
    %345 = vmatpush1.msra.mxu0 0.0
    %346 = vmatprep.subr.mxu0 0.0
    %347 = vmatpush1.msra.mxu0 0.0
    %348 = vmatprep.subr.mxu0 0.0
    %349 = vmatpush1.msra.mxu0 0.0
    %350 = vmatprep.subr.mxu0 0.0
    %351 = vmatpush1.msra.mxu0 0.0
    %352 = vmatprep.subr.mxu0 0.0
    %353 = vmatpush1.msra.mxu0 0.0
    %354 = vmatprep.subr.mxu0 0.0
    %355 = vmatpush1.msra.mxu0 0.0
    %356 = vmatprep.subr.mxu0 0.0
    %357 = vmatpush1.msra.mxu0 0.0
    %358 = vmatprep.subr.mxu0 0.0
    %359 = vmatpush1.msra.mxu0 0.0
    %360 = vmatprep.subr.mxu0 0.0
    %361 = vmatpush1.msra.mxu0 0.0
    %362 = vmatprep.mubr.f32.mxu0 0.0
    %363 = vmatmul.mubr.f32.gmra.mrb[0].mxu0 %v278
    %v364 = vpop.f32.mrb[0].mxu0
    %v365 = vadd.f32 0.0, %v364
    %v366 = vpop.f32.mrb[0].mxu0
    %367 = vmatprep.mubr.f32.mxu0 0.0
    %368 = vmatmul.mubr.f32.gmra.mrb[0].mxu0 %v279
    %v369 = vpop.f32.mrb[0].mxu0
    %v370 = vadd.f32 0.0, %v369
    %v371 = vpop.f32.mrb[0].mxu0
    %372 = vmatprep.mubr.f32.mxu0 0.0
    %373 = vmatmul.mubr.f32.gmra.mrb[0].mxu0 %v280
    %v374 = vpop.f32.mrb[0].mxu0
    %v375 = vadd.f32 0.0, %v374
    %v376 = vpop.f32.mrb[0].mxu0
    %377 = vmatprep.mubr.f32.mxu0 0.0
    %378 = vmatmul.mubr.f32.gmra.mrb[0].mxu0 %v281
    %v379 = vpop.f32.mrb[0].mxu0
    %v380 = vadd.f32 0.0, %v379
    %v381 = vpop.f32.mrb[0].mxu0
    %382 = vdwg.mxu0
    %v383 = vadd.f32 %v152, %v365
    %v384 = vadd.f32 %v157, %v370
    %v385 = vadd.f32 %v162, %v375
    %v386 = vadd.f32 %v167, %v380
    %v387 = vld [vmem:[%s6] sm:$0x1]
    %v389 = vlaneseq
    %v390 = vshrl.u32 %v389, 7
    %v391 = vsub.s32 0, %v390
    %v392 = vrot.slane %v387, %v391
    %v394 = vadd.f32 %v383, %v392
    %v395 = vadd.f32 %v384, %v392
    %v396 = vadd.f32 %v385, %v392
    %v397 = vadd.f32 %v386, %v392
    %398 = vst [vmem:[#allocation7] sm:$0xff] %v394
    %399 = vst [vmem:[#allocation7 + $0x8] sm:$0xff] %v395
    %400 = vst [vmem:[#allocation7 + $0x10] sm:$0xff] %v396
    %401 = vst [vmem:[#allocation7 + $0x18] sm:$0xff] %v397
    // Predicated region
    $region38: #{tpu_custom_call.1} parent=1 // pred_check
      _
    $region39: #{tpu_custom_call.1} parent=1 // pred_check_branch
      %403 = sbr.rel (0) target = $region41
    $region40: #{tpu_custom_call.1} parent=1 // pred_region
      %s405 = ssub.s32 512, 512
      %406 = vsyncadd [#allocation4], %s405
      %s407 = sshll.u32 [#allocation7], 4
      %s408 = int_to_ptr.vmem [resolvable:$true] %s407
      %413 = dma.vmem_to_hbm [thread:$0]  %s408, 512, %s7, [#allocation4], 128, 128, 8
    $region41: #{tpu_custom_call.1} parent=1 // pred_fallthru
      _
    // Predicated region
    $region42: #{tpu_custom_call.1} parent=1 // pred_check
      _
    $region43: #{tpu_custom_call.1} parent=1 // pred_check_branch
      %415 = sbr.rel (0) target = $region45
    $region44: #{tpu_custom_call.1} parent=1 // pred_region
      %416 = dma.done [#allocation4], 512
    $region45: #{tpu_custom_call.1} parent=1 // pred_fallthru
      _
    %417 = vsyncpa [#allocation3], 1
    %418 = vsyncpa [#allocation6], 1
    %419 = vsyncpa [#allocation4], 1

</llo_original>
